<compile_context>
chip_gen: v6e
topology: v6e:2x2x1
jax: 0.10.0
libtpu: 0.0.40
codegen_flags: <defaults>
</compile_context>

<pallas_src>
import functools
import math

import numpy as np

import jax
import jax.numpy as jnp
from jax.experimental import pallas as pl
from jax.experimental.pallas import tpu as pltpu


# ---------------------------------------------------------------------------
# Kernel
# ---------------------------------------------------------------------------
def data_embedding_kernel(x_ref, w_ref, pos_ref, o_ref):
    # x_ref:   (bt, L, C)   full-sequence slab for the current batch block
    #                       (index_map ignores the seq grid axis, so this is
    #                        DMA'd once per batch block, not once per step)
    # w_ref:   (3C, D)      fused circular-conv taps [W_prev; W_self; W_next]
    # pos_ref: (L, D)       normalized sincos table rows [0, L) (resident)
    # o_ref:   (bt, lt, D)  output tile (lane-dense when D % 128 == 0)
    j = pl.program_id(1)
    bt, seq_len, c_in = x_ref.shape
    lt, d_model = o_ref.shape[1], o_ref.shape[2]

    row0 = pl.multiple_of(j * lt, lt)
    x_win = x_ref[:, pl.ds(row0, lt), :]                       # rows [j*lt, j*lt+lt)

    # Circular halo rows (wraparound only happens at the global sequence ends).
    prev_idx = (row0 + seq_len - 1) % seq_len                  # (j*lt - 1) mod L
    next_idx = (row0 + lt) % seq_len                           # (j*lt + lt) mod L
    prev_row = x_ref[:, pl.ds(prev_idx, 1), :]                 # (bt, 1, C)
    next_row = x_ref[:, pl.ds(next_idx, 1), :]                 # (bt, 1, C)
    x_prev = jnp.concatenate([prev_row, x_win[:, : lt - 1, :]], axis=1)
    x_next = jnp.concatenate([x_win[:, 1:, :], next_row], axis=1)

    # im2col over channels -> one fused MXU matmul for all three taps.
    xc = jnp.concatenate([x_prev, x_win, x_next], axis=-1)     # (bt, lt, 3C)
    y = jnp.dot(xc.reshape(bt * lt, 3 * c_in), w_ref[...],
                preferred_element_type=jnp.float32)            # (bt*lt, D) f32

    # Fused positional-embedding add, then a single lane-dense store.
    pos = pos_ref[pl.ds(row0, lt), :]                          # (lt, D)
    y = y.reshape(bt, lt, d_model) + pos[None, :, :]
    o_ref[...] = y.astype(o_ref.dtype)


# ---------------------------------------------------------------------------
# Helpers
# ---------------------------------------------------------------------------
@functools.lru_cache(maxsize=None)
def _sincos_positional_table(d_model, q_len=5000):
    """PositionalEncoding(q_len, d_model, normalize=True) from the module.

    Built once on the host (numpy) and cached, so the 5000 x D sin/cos build,
    strided interleave and full-table mean/std do NOT run on every forward.
    """
    assert d_model % 2 == 0, "d_model must be even for sincos positional encoding"
    position = np.arange(q_len, dtype=np.float32)[:, None]                 # (q_len, 1)
    div_term = np.exp(np.arange(0, d_model, 2, dtype=np.float32)
                      * (-(math.log(10000.0) / d_model)))                  # (d_model/2,)
    ang = position * div_term                                              # (q_len, d/2)
    pe = np.zeros((q_len, d_model), dtype=np.float32)
    pe[:, 0::2] = np.sin(ang)
    pe[:, 1::2] = np.cos(ang)
    # normalize=True: mean/std over the FULL table (torch.std is unbiased).
    pe = pe - pe.mean()
    pe = pe / (pe.std(ddof=1) * 10.0)
    return jnp.asarray(pe)


def _pick_blocks(batch, seq_len, d_model, itemsize, *,
                 max_block_bytes=2 << 20,     # hard cap: safe in v5e's 16 MiB scoped VMEM
                 min_block_bytes=512 << 10,   # below ~512 KiB the HBM BW plateau drops
                 target_steps=8):             # >= 8 steps: both v7x TCs get a deep pipeline
    """Pick (batch_block, seq_block) for the output tiling."""
    lt_opts = [l for l in range(8, seq_len + 1, 8) if seq_len % l == 0]
    bt_opts = [b for b in range(1, batch + 1) if batch % b == 0]
    if not lt_opts:
        # No multiple-of-8 divisor: use the full sequence and bt=1 so the
        # in-kernel (bt*lt, 3C) row merge stays layout-trivial.
        lt_opts, bt_opts = [seq_len], [1]

    def key(cand):
        bt, lt = cand
        blk = bt * lt * d_model * itemsize
        steps = (batch // bt) * (seq_len // lt)
        fits = blk <= max_block_bytes
        return (
            fits,                        # 1) never blow the VMEM cap
            blk >= min_block_bytes,      # 2) keep blocks >= ~512 KiB when reachable
            steps >= target_steps,       # 3) then prefer a deep grid (DMA overlap / 2 TCs)
            blk if fits else -blk,       # 4) then the biggest block (fewest step overheads)
            steps,                       # 5) then the deepest grid
        )

    return max(((bt, lt) for bt in bt_opts for lt in lt_opts), key=key)


def _vmem_limit_bytes(bt, lt, seq_len, c_in, d_model, out_itemsize):
    """Generous scoped-VMEM estimate for this tiling, clamped to [8, 32] MiB."""
    lane = 128
    pad = lambda n: -(-n // lane) * lane
    x_buf = 2 * bt * seq_len * pad(c_in) * 4               # input slab (x2 buffers, lane-padded)
    w_buf = 2 * (-(-3 * c_in // 8) * 8) * d_model * 4      # fused taps (worst case x2)
    pos_buf = 2 * seq_len * d_model * 4                    # pos table (worst case x2)
    out_buf = 2 * bt * lt * d_model * out_itemsize         # output tile (x2 buffers)
    tmp = bt * lt * (2 * d_model + 3 * pad(3 * c_in)) * 4  # y f32 + xc / halo temporaries
    est = x_buf + w_buf + pos_buf + out_buf + tmp
    return int(min(max(est + est // 2 + (1 << 20), 8 << 20), 32 << 20))


# ---------------------------------------------------------------------------
# Wrapper (factory: weights / positional table prepared once)
# ---------------------------------------------------------------------------
def make_data_embedding_wo_temp(conv_weight, *, q_len=5000, out_dtype=None):
    """Builds the forward of DataEmbedding_wo_temp (eval mode).

    conv_weight: [3, C_in, d_model]  (PyTorch Conv1d weight [D, C, 3] transposed
                 with (2, 1, 0) so each tap is a (C_in, D) operand)
    """
    K, C, D = conv_weight.shape
    assert K == 3, "TokenEmbedding uses kernel_size=3"
    # Hoisted out of the per-call path (feedback): fused 2-D weight with rows
    # ordered [W_prev(C); W_self(C); W_next(C)], and the cached sincos table.
    w2d = jnp.reshape(jnp.asarray(conv_weight, jnp.float32), (3 * C, D))
    pos_full = _sincos_positional_table(D, q_len)            # (q_len, D), cached

    def forward(x, x_mark=None):
        del x_mark  # not used by the module's forward
        B, L, C_in = x.shape
        assert C_in == C and L <= q_len
        out_dt = jnp.dtype(out_dtype) if out_dtype is not None else x.dtype

        pos = pos_full[:L]                                    # (L, D): cheap slice only
        bt, lt = _pick_blocks(B, L, D, out_dt.itemsize)
        grid = (B // bt, L // lt)
        vmem_limit = _vmem_limit_bytes(bt, lt, L, C, D, out_dt.itemsize)

        def build(single_buffer_invariant):
            # Grid-invariant operands: the second pipeline buffer is pure waste.
            inv = ({"pipeline_mode": pl.Buffered(1)}
                   if single_buffer_invariant else {})
            grid_spec = pltpu.PrefetchScalarGridSpec(
                num_scalar_prefetch=0,
                grid=grid,
                in_specs=[
                    # Full-seq slab per batch block: DMA'd only when i changes,
                    # so the lane-sparse x is not re-fetched every seq step.
                    pl.BlockSpec((bt, L, C), lambda i, j: (i, 0, 0)),
                    pl.BlockSpec((3 * C, D), lambda i, j: (0, 0), **inv),
                    pl.BlockSpec((L, D), lambda i, j: (0, 0), **inv),
                ],
                out_specs=pl.BlockSpec((bt, lt, D), lambda i, j: (i, j, 0)),
            )
            return pl.pallas_call(
                data_embedding_kernel,
                out_shape=jax.ShapeDtypeStruct((B, L, D), out_dt),
                grid_spec=grid_spec,
                compiler_params=pltpu.CompilerParams(
                    dimension_semantics=("parallel", "parallel"),
                    vmem_limit_bytes=vmem_limit,
                ),
            )

        try:
            out = build(True)(x, w2d, pos)
        except Exception:
            # Fallback for jax versions without BlockSpec.pipeline_mode /
            # single-buffering support: default double buffering (identical math).
            out = build(False)(x, w2d, pos)

        # Dropout(p=0.1) is identity in eval mode.
        # TODO(synk): training-mode dropout (pltpu.prng_* random mask) omitted.
        return out

    return forward


def data_embedding_wo_temp(x, x_mark, conv_weight, *, q_len=5000):
    """One-shot convenience wrapper (prefer make_data_embedding_wo_temp)."""
    return make_data_embedding_wo_temp(conv_weight, q_len=q_len)(x, x_mark)


# ---------------------------------------------------------------------------
# Pure-JAX reference (for correctness check)
# ---------------------------------------------------------------------------
def _reference(x, conv_weight, *, q_len=5000):
    B, L, C = x.shape
    D = conv_weight.shape[-1]
    x_prev = jnp.roll(x, 1, axis=1)
    x_next = jnp.roll(x, -1, axis=1)
    hi = jax.lax.Precision.HIGHEST
    tok = (jnp.einsum('blc,cd->bld', x_prev, conv_weight[0], precision=hi) +
           jnp.einsum('blc,cd->bld', x,      conv_weight[1], precision=hi) +
           jnp.einsum('blc,cd->bld', x_next, conv_weight[2], precision=hi))
    pos = _sincos_positional_table(D, q_len)[:L]
    return tok + pos[None, :, :]


# ---------------------------------------------------------------------------
# Demo / self-check
# ---------------------------------------------------------------------------
if __name__ == "__main__":
    key = jax.random.PRNGKey(0)
    B, L, C_IN, D_MODEL = 4, 32, 8, 128   # D multiple of 128 -> lane-dense stores

    k_x, k_mark, k_w = jax.random.split(key, 3)
    x = jax.random.normal(k_x, (B, L, C_IN), dtype=jnp.float32)
    # x_mark: time features (unused by forward), freq='h' -> 4 features
    x_mark = jax.random.normal(k_mark, (B, L, 4), dtype=jnp.float32)

    # Conv1d weight, kaiming_normal_(mode='fan_in', nonlinearity='leaky_relu').
    # PyTorch weight shape: [d_model, c_in, 3]; fan_in = c_in * 3.
    fan_in = C_IN * 3
    gain = math.sqrt(2.0 / (1.0 + 0.01 ** 2))
    std = gain / math.sqrt(fan_in)
    w_torch_layout = std * jax.random.normal(
        k_w, (D_MODEL, C_IN, 3), dtype=jnp.float32)
    conv_weight = jnp.transpose(w_torch_layout, (2, 1, 0))   # (K=3, C_in, D)

    embed = make_data_embedding_wo_temp(conv_weight)   # weights / pos table prepared once
    out = jax.block_until_ready(embed(x, x_mark))

    ref = _reference(x, conv_weight)
    assert out.shape == (B, L, D_MODEL)
    max_err = float(jnp.max(jnp.abs(out - ref)))
    assert jnp.allclose(out, ref, atol=1e-4, rtol=1e-4), max_err

    print("KERNEL_OK")
</pallas_src>

<mosaic_0001>
module attributes {stable_mosaic.version = 11 : i64} {
  func.func @data_embedding_kernel(%arg0: i32, %arg1: i32, %arg2: memref<1x32x8xf32, #tpu.memory_space<vmem>>, %arg3: memref<24x128xf32, #tpu.memory_space<vmem>>, %arg4: memref<32x128xf32, #tpu.memory_space<vmem>>, %arg5: memref<1x16x128xf32, #tpu.memory_space<vmem>>) attributes {dimension_semantics = [#tpu.dimension_semantics<parallel>, #tpu.dimension_semantics<parallel>], iteration_bounds = array<i64: 4, 2>, scalar_prefetch = 0 : i64, scratch_operands = 0 : i64, tpu.core_type = #tpu.core_type<tc>, window_params = [{transform_indices = @transform_0, window_bounds = array<i64: 1, 32, 8>}, {pipeline_mode = #tpu.pipeline_mode<synchronous>, transform_indices = @transform_1, window_bounds = array<i64: 24, 128>}, {pipeline_mode = #tpu.pipeline_mode<synchronous>, transform_indices = @transform_2, window_bounds = array<i64: 32, 128>}, {transform_indices = @transform_3, window_bounds = array<i64: 1, 16, 128>}]} {
    %c16_i32 = arith.constant 16 : i32
    %0 = arith.muli %arg1, %c16_i32 : i32
    %1 = tpu.assume_multiple %0, 16 : i32
    %c0 = arith.constant 0 : index
    %2 = arith.index_cast %1 : i32 to index
    %c0_0 = arith.constant 0 : index
    %3 = vector.load %arg2[%c0, %2, %c0_0] : memref<1x32x8xf32, #tpu.memory_space<vmem>>, vector<1x16x8xf32>
    %c32_i32 = arith.constant 32 : i32
    %4 = arith.addi %1, %c32_i32 : i32
    %c1_i32 = arith.constant 1 : i32
    %5 = arith.subi %4, %c1_i32 : i32
    %c32_i32_1 = arith.constant 32 : i32
    %c0_i32 = arith.constant 0 : i32
    %6 = arith.cmpi eq, %c32_i32_1, %c0_i32 : i32
    %c1_i32_2 = arith.constant 1 : i32
    %7 = arith.select %6, %c1_i32_2, %c32_i32_1 : i32
    %8 = arith.remsi %5, %7 : i32
    %c0_i32_3 = arith.constant 0 : i32
    %9 = arith.cmpi ne, %8, %c0_i32_3 : i32
    %c0_i32_4 = arith.constant 0 : i32
    %10 = arith.cmpi slt, %8, %c0_i32_4 : i32
    %c0_i32_5 = arith.constant 0 : i32
    %11 = arith.cmpi slt, %7, %c0_i32_5 : i32
    %12 = arith.xori %10, %11 : i1
    %13 = arith.andi %12, %9 : i1
    %14 = arith.addi %8, %7 : i32
    %15 = arith.select %13, %14, %8 : i32
    %c16_i32_6 = arith.constant 16 : i32
    %16 = arith.addi %1, %c16_i32_6 : i32
    %c32_i32_7 = arith.constant 32 : i32
    %c0_i32_8 = arith.constant 0 : i32
    %17 = arith.cmpi eq, %c32_i32_7, %c0_i32_8 : i32
    %c1_i32_9 = arith.constant 1 : i32
    %18 = arith.select %17, %c1_i32_9, %c32_i32_7 : i32
    %19 = arith.remsi %16, %18 : i32
    %c0_i32_10 = arith.constant 0 : i32
    %20 = arith.cmpi ne, %19, %c0_i32_10 : i32
    %c0_i32_11 = arith.constant 0 : i32
    %21 = arith.cmpi slt, %19, %c0_i32_11 : i32
    %c0_i32_12 = arith.constant 0 : i32
    %22 = arith.cmpi slt, %18, %c0_i32_12 : i32
    %23 = arith.xori %21, %22 : i1
    %24 = arith.andi %23, %20 : i1
    %25 = arith.addi %19, %18 : i32
    %26 = arith.select %24, %25, %19 : i32
    %c0_13 = arith.constant 0 : index
    %27 = arith.index_cast %15 : i32 to index
    %c0_14 = arith.constant 0 : index
    %28 = vector.load %arg2[%c0_13, %27, %c0_14] : memref<1x32x8xf32, #tpu.memory_space<vmem>>, vector<1x1x8xf32>
    %c0_15 = arith.constant 0 : index
    %29 = arith.index_cast %26 : i32 to index
    %c0_16 = arith.constant 0 : index
    %30 = vector.load %arg2[%c0_15, %29, %c0_16] : memref<1x32x8xf32, #tpu.memory_space<vmem>>, vector<1x1x8xf32>
    %31 = vector.extract_strided_slice %3 {offsets = [0, 0, 0], sizes = [1, 15, 8], strides = [1, 1, 1]} : vector<1x16x8xf32> to vector<1x15x8xf32>
    %32 = tpu.concatenate %28, %31 in 1 : vector<1x1x8xf32>, vector<1x15x8xf32> -> vector<1x16x8xf32>
    %33 = vector.extract_strided_slice %3 {offsets = [0, 1, 0], sizes = [1, 15, 8], strides = [1, 1, 1]} : vector<1x16x8xf32> to vector<1x15x8xf32>
    %34 = tpu.concatenate %33, %30 in 1 : vector<1x15x8xf32>, vector<1x1x8xf32> -> vector<1x16x8xf32>
    %35 = tpu.concatenate %32, %3, %34 in 2 : vector<1x16x8xf32>, vector<1x16x8xf32>, vector<1x16x8xf32> -> vector<1x16x24xf32>
    %36 = vector.shape_cast %35 : vector<1x16x24xf32> to vector<16x24xf32>
    %c0_17 = arith.constant 0 : index
    %c0_18 = arith.constant 0 : index
    %37 = vector.load %arg3[%c0_17, %c0_18] : memref<24x128xf32, #tpu.memory_space<vmem>>, vector<24x128xf32>
    %cst = arith.constant dense<0.000000e+00> : vector<16x128xf32>
    %38 = tpu.matmul %36, %37, %cst {dimension_numbers = #tpu.dot_dimension_numbers<[1], [0], [0], [1], [0, 0, 1, 1], [], []>} : vector<16x24xf32>, vector<24x128xf32>, vector<16x128xf32> -> vector<16x128xf32>
    %39 = arith.index_cast %1 : i32 to index
    %c0_19 = arith.constant 0 : index
    %40 = vector.load %arg4[%39, %c0_19] : memref<32x128xf32, #tpu.memory_space<vmem>>, vector<16x128xf32>
    %41 = vector.shape_cast %38 : vector<16x128xf32> to vector<1x16x128xf32>
    %42 = vector.shape_cast %40 : vector<16x128xf32> to vector<1x16x128xf32>
    %43 = arith.addf %41, %42 : vector<1x16x128xf32>
    %c0_20 = arith.constant 0 : index
    %c0_21 = arith.constant 0 : index
    %c0_22 = arith.constant 0 : index
    %44 = vector.load %arg5[%c0_20, %c0_21, %c0_22] : memref<1x16x128xf32, #tpu.memory_space<vmem>>, vector<1x16x128xf32>
    tpu.vector_store %arg5[%c0_20, %c0_21, %c0_22], %43 {strides = array<i32>} : memref<1x16x128xf32, #tpu.memory_space<vmem>>, vector<1x16x128xf32>,
    return
  }
  func.func @transform_0(%arg0: i32, %arg1: i32) -> (i32, i32, i32) {
    %c0_i32 = arith.constant 0 : i32
    %c0_i32_0 = arith.constant 0 : i32
    %c0_i32_1 = arith.constant 0 : i32
    return %arg0, %c0_i32, %c0_i32_0 : i32, i32, i32
  }
  func.func @transform_1(%arg0: i32, %arg1: i32) -> (i32, i32) {
    %c0_i32 = arith.constant 0 : i32
    %c0_i32_0 = arith.constant 0 : i32
    %c0_i32_1 = arith.constant 0 : i32
    return %c0_i32, %c0_i32_0 : i32, i32
  }
  func.func @transform_2(%arg0: i32, %arg1: i32) -> (i32, i32) {
    %c0_i32 = arith.constant 0 : i32
    %c0_i32_0 = arith.constant 0 : i32
    %c0_i32_1 = arith.constant 0 : i32
    return %c0_i32, %c0_i32_0 : i32, i32
  }
  func.func @transform_3(%arg0: i32, %arg1: i32) -> (i32, i32, i32) {
    %c0_i32 = arith.constant 0 : i32
    %c0_i32_0 = arith.constant 0 : i32
    return %arg0, %arg1, %c0_i32 : i32, i32, i32
  }
}

module attributes {stable_mosaic.version = 11 : i64} {
  func.func @data_embedding_kernel(%arg0: i32, %arg1: i32, %arg2: memref<1x32x8xf32, #tpu.memory_space<vmem>>, %arg3: memref<24x128xf32, #tpu.memory_space<vmem>>, %arg4: memref<32x128xf32, #tpu.memory_space<vmem>>, %arg5: memref<1x16x128xf32, #tpu.memory_space<vmem>>) attributes {dimension_semantics = [#tpu.dimension_semantics<parallel>, #tpu.dimension_semantics<parallel>], iteration_bounds = array<i64: 4, 2>, scalar_prefetch = 0 : i64, scratch_operands = 0 : i64, tpu.core_type = #tpu.core_type<tc>, window_params = [{transform_indices = @transform_0, window_bounds = array<i64: 1, 32, 8>}, {pipeline_mode = #tpu.pipeline_mode<synchronous>, transform_indices = @transform_1, window_bounds = array<i64: 24, 128>}, {pipeline_mode = #tpu.pipeline_mode<synchronous>, transform_indices = @transform_2, window_bounds = array<i64: 32, 128>}, {transform_indices = @transform_3, window_bounds = array<i64: 1, 16, 128>}]} {
    %c16_i32 = arith.constant 16 : i32
    %0 = arith.muli %arg1, %c16_i32 : i32
    %1 = tpu.assume_multiple %0, 16 : i32
    %c0 = arith.constant 0 : index
    %2 = arith.index_cast %1 : i32 to index
    %c0_0 = arith.constant 0 : index
    %3 = vector.load %arg2[%c0, %2, %c0_0] : memref<1x32x8xf32, #tpu.memory_space<vmem>>, vector<1x16x8xf32>
    %c32_i32 = arith.constant 32 : i32
    %4 = arith.addi %1, %c32_i32 : i32
    %c1_i32 = arith.constant 1 : i32
    %5 = arith.subi %4, %c1_i32 : i32
    %c32_i32_1 = arith.constant 32 : i32
    %c0_i32 = arith.constant 0 : i32
    %6 = arith.cmpi eq, %c32_i32_1, %c0_i32 : i32
    %c1_i32_2 = arith.constant 1 : i32
    %7 = arith.select %6, %c1_i32_2, %c32_i32_1 : i32
    %8 = arith.remsi %5, %7 : i32
    %c0_i32_3 = arith.constant 0 : i32
    %9 = arith.cmpi ne, %8, %c0_i32_3 : i32
    %c0_i32_4 = arith.constant 0 : i32
    %10 = arith.cmpi slt, %8, %c0_i32_4 : i32
    %c0_i32_5 = arith.constant 0 : i32
    %11 = arith.cmpi slt, %7, %c0_i32_5 : i32
    %12 = arith.xori %10, %11 : i1
    %13 = arith.andi %12, %9 : i1
    %14 = arith.addi %8, %7 : i32
    %15 = arith.select %13, %14, %8 : i32
    %c16_i32_6 = arith.constant 16 : i32
    %16 = arith.addi %1, %c16_i32_6 : i32
    %c32_i32_7 = arith.constant 32 : i32
    %c0_i32_8 = arith.constant 0 : i32
    %17 = arith.cmpi eq, %c32_i32_7, %c0_i32_8 : i32
    %c1_i32_9 = arith.constant 1 : i32
    %18 = arith.select %17, %c1_i32_9, %c32_i32_7 : i32
    %19 = arith.remsi %16, %18 : i32
    %c0_i32_10 = arith.constant 0 : i32
    %20 = arith.cmpi ne, %19, %c0_i32_10 : i32
    %c0_i32_11 = arith.constant 0 : i32
    %21 = arith.cmpi slt, %19, %c0_i32_11 : i32
    %c0_i32_12 = arith.constant 0 : i32
    %22 = arith.cmpi slt, %18, %c0_i32_12 : i32
    %23 = arith.xori %21, %22 : i1
    %24 = arith.andi %23, %20 : i1
    %25 = arith.addi %19, %18 : i32
    %26 = arith.select %24, %25, %19 : i32
    %c0_13 = arith.constant 0 : index
    %27 = arith.index_cast %15 : i32 to index
    %c0_14 = arith.constant 0 : index
    %28 = vector.load %arg2[%c0_13, %27, %c0_14] : memref<1x32x8xf32, #tpu.memory_space<vmem>>, vector<1x1x8xf32>
    %c0_15 = arith.constant 0 : index
    %29 = arith.index_cast %26 : i32 to index
    %c0_16 = arith.constant 0 : index
    %30 = vector.load %arg2[%c0_15, %29, %c0_16] : memref<1x32x8xf32, #tpu.memory_space<vmem>>, vector<1x1x8xf32>
    %31 = vector.extract_strided_slice %3 {offsets = [0, 0, 0], sizes = [1, 15, 8], strides = [1, 1, 1]} : vector<1x16x8xf32> to vector<1x15x8xf32>
    %32 = tpu.concatenate %28, %31 in 1 : vector<1x1x8xf32>, vector<1x15x8xf32> -> vector<1x16x8xf32>
    %33 = vector.extract_strided_slice %3 {offsets = [0, 1, 0], sizes = [1, 15, 8], strides = [1, 1, 1]} : vector<1x16x8xf32> to vector<1x15x8xf32>
    %34 = tpu.concatenate %33, %30 in 1 : vector<1x15x8xf32>, vector<1x1x8xf32> -> vector<1x16x8xf32>
    %35 = tpu.concatenate %32, %3, %34 in 2 : vector<1x16x8xf32>, vector<1x16x8xf32>, vector<1x16x8xf32> -> vector<1x16x24xf32>
    %36 = vector.shape_cast %35 : vector<1x16x24xf32> to vector<16x24xf32>
    %c0_17 = arith.constant 0 : index
    %c0_18 = arith.constant 0 : index
    %37 = vector.load %arg3[%c0_17, %c0_18] : memref<24x128xf32, #tpu.memory_space<vmem>>, vector<24x128xf32>
    %cst = arith.constant dense<0.000000e+00> : vector<16x128xf32>
    %38 = tpu.matmul %36, %37, %cst {dimension_numbers = #tpu.dot_dimension_numbers<[1], [0], [0], [1], [0, 0, 1, 1], [], []>} : vector<16x24xf32>, vector<24x128xf32>, vector<16x128xf32> -> vector<16x128xf32>
    %39 = arith.index_cast %1 : i32 to index
    %c0_19 = arith.constant 0 : index
    %40 = vector.load %arg4[%39, %c0_19] : memref<32x128xf32, #tpu.memory_space<vmem>>, vector<16x128xf32>
    %41 = vector.shape_cast %38 : vector<16x128xf32> to vector<1x16x128xf32>
    %42 = vector.shape_cast %40 : vector<16x128xf32> to vector<1x16x128xf32>
    %43 = arith.addf %41, %42 : vector<1x16x128xf32>
    %c0_20 = arith.constant 0 : index
    %c0_21 = arith.constant 0 : index
    %c0_22 = arith.constant 0 : index
    %44 = vector.load %arg5[%c0_20, %c0_21, %c0_22] : memref<1x16x128xf32, #tpu.memory_space<vmem>>, vector<1x16x128xf32>
    tpu.vector_store %arg5[%c0_20, %c0_21, %c0_22], %43 {strides = array<i32>} : memref<1x16x128xf32, #tpu.memory_space<vmem>>, vector<1x16x128xf32>,
    return
  }
  func.func @transform_0(%arg0: i32, %arg1: i32) -> (i32, i32, i32) {
    %c0_i32 = arith.constant 0 : i32
    %c0_i32_0 = arith.constant 0 : i32
    %c0_i32_1 = arith.constant 0 : i32
    return %arg0, %c0_i32, %c0_i32_0 : i32, i32, i32
  }
  func.func @transform_1(%arg0: i32, %arg1: i32) -> (i32, i32) {
    %c0_i32 = arith.constant 0 : i32
    %c0_i32_0 = arith.constant 0 : i32
    %c0_i32_1 = arith.constant 0 : i32
    return %c0_i32, %c0_i32_0 : i32, i32
  }
  func.func @transform_2(%arg0: i32, %arg1: i32) -> (i32, i32) {
    %c0_i32 = arith.constant 0 : i32
    %c0_i32_0 = arith.constant 0 : i32
    %c0_i32_1 = arith.constant 0 : i32
    return %c0_i32, %c0_i32_0 : i32, i32
  }
  func.func @transform_3(%arg0: i32, %arg1: i32) -> (i32, i32, i32) {
    %c0_i32 = arith.constant 0 : i32
    %c0_i32_0 = arith.constant 0 : i32
    return %arg0, %arg1, %c0_i32 : i32, i32, i32
  }
}

</mosaic_0001>

<llo_original>
// kernel: tpu_custom_call.1
$region0: #{tpu_custom_call.1}
  #allocation0 [shape = 'u32[]', space=smem, size = 0x4, offset = 0x4, fixed_abs, tag = 'smem constant byte address 0x4 - core index']
  #allocation1 [shape = 'u32[144,128]{1,0:T(1,128)}', space=vmem, size = 0x12000, scoped, tag = 'internal scratch']
  %s0 = inlined_call_operand.vmem [shape: f32[4,32,8], index: 0, kind: input, shape index: {}]
  %s1 = inlined_call_operand.vmem [shape: f32[24,128], index: 1, kind: input, shape index: {}]
  %s2 = inlined_call_operand.vmem [shape: f32[32,128], index: 2, kind: input, shape index: {}]
  %s3 = inlined_call_operand.hbm [shape: f32[4,32,128], index: 3, kind: output, shape index: {}]
  %s4 = sld [smem:[#allocation0]]
  $region45: #{tpu_custom_call.1} parent=0
    _
  %s6 = ssub.s32 1, %s4
  %s7 = scalar_select 0, %s6, %s4
  $region1: #{tpu_custom_call.1} parent=0
    #allocation2 [shape = 'u8[16384]{0}', space=vmem, size = 0x4000, scoped, tag = 'output window, operand 0']
    #allocation3 [shape = 's32[2]{0}', space=sflag, size = 0x8, scoped, tag = 'scoped memory for tpu_custom_call.1']
    %8 = vsyncpa [#allocation3], 0
    %s9 = scalar_lea.sflag [#allocation3], 1
    %10 = vsyncpa %s9, 0
    loop: start=0, step=1, limit=10
    $region2: #{tpu_custom_call.1} parent=1 // loop_pre_header
      _
    $region3: #{tpu_custom_call.1} parent=1 // loop_header
      %s12 = sphi 0, %s16
      %p13 = scmp.ge.s32.totalorder %s12, 10
      %s19 = sphi 0, %s31
      %s20 = sphi 0, %s27
      %s21 = sphi 0, %s19
      %s22 = sphi 0, %s20
      %s23 = sphi 0, %s21
      %s24 = sphi 0, %s22
      %s34 = sphi 0, %s36
      %s37 = sphi 0, %s34
      %s38 = sphi 0, %s37
      %s54 = sphi 0, %s38
      %s58 = sphi 0, %s58
      %s60 = sphi 0, %s58
      %s61 = sphi 0, %s60
      %s75 = sphi 0, %s61
      %s79 = sphi 0, %s79
      %s81 = sphi 0, %s79
      %s82 = sphi 0, %s81
      %s96 = sphi 0, %s82
      %s104 = sphi 0, %s106
      %s107 = sphi 0, %s104
      %s108 = sphi 0, %s107
      %s124 = sphi 0, %s108
    $region4: #{tpu_custom_call.1} parent=1 // loop_header_branch
      %15 = sbr.rel (%p13) target = $region8
    $region5: #{tpu_custom_call.1} parent=1 // loop_body
      %s17 = ssub.s32 %s12, 1
      %s18 = ssub.s32 %s12, 2
      %s25 = sadd.s32 1, %s20
      %p26 = scmp.ge.s32.totalorder %s25, 2
      %s27 = scalar_select %p26, 0, %s25
      %s28 = sadd.s32 1, %s19
      %s29 = scalar_select %p26, %s28, %s19
      %p30 = scmp.ge.s32.totalorder %s29, 4
      %s31 = scalar_select %p30, 0, %s29
      %s32 = ssub.s32 %s19, %s31
      %p33 = scmp.eq.s32.totalorder %s32, 0
      %s35 = sadd.s32 %s34, 1
      %s36 = scalar_select %p33, %s34, %s35
      %p39 = pneg %p33
      %p40 = scmp.eq.s32.totalorder %s12, 7
      %p41 = por %p39, %p40
      %p42 = scmp.ne.s32.totalorder %s34, %s37
      %p43 = scmp.eq.s32.totalorder %s12, 0
      %p44 = por %p42, %p43
      %p45 = scmp.ne.s32.totalorder %s34, %s37
      %p46 = scmp.eq.s32.totalorder %s17, 7
      %p47 = por %p45, %p46
      %p48 = scmp.ne.s32.totalorder %s37, %s38
      %p49 = scmp.eq.s32.totalorder %s17, 0
      %p50 = por %p48, %p49
      %p51 = scmp.ne.s32.totalorder %s37, %s38
      %p52 = scmp.eq.s32.totalorder %s18, 7
      %p53 = por %p51, %p52
      %p55 = scmp.ne.s32.totalorder %s38, %s54
      %p56 = scmp.eq.s32.totalorder %s18, 0
      %p57 = por %p55, %p56
      %s59 = sadd.s32 %s58, 1
      %p62 = scmp.eq.s32.totalorder %s12, 7
      %p63 = scmp.ne.s32.totalorder %s58, %s60
      %p64 = scmp.eq.s32.totalorder %s12, 0
      %p65 = por %p63, %p64
      %p66 = scmp.ne.s32.totalorder %s58, %s60
      %p67 = scmp.eq.s32.totalorder %s17, 7
      %p68 = por %p66, %p67
      %p69 = scmp.ne.s32.totalorder %s60, %s61
      %p70 = scmp.eq.s32.totalorder %s17, 0
      %p71 = por %p69, %p70
      %p72 = scmp.ne.s32.totalorder %s60, %s61
      %p73 = scmp.eq.s32.totalorder %s18, 7
      %p74 = por %p72, %p73
      %p76 = scmp.ne.s32.totalorder %s61, %s75
      %p77 = scmp.eq.s32.totalorder %s18, 0
      %p78 = por %p76, %p77
      %s80 = sadd.s32 %s79, 1
      %p83 = scmp.eq.s32.totalorder %s12, 7
      %p84 = scmp.ne.s32.totalorder %s79, %s81
      %p85 = scmp.eq.s32.totalorder %s12, 0
      %p86 = por %p84, %p85
      %p87 = scmp.ne.s32.totalorder %s79, %s81
      %p88 = scmp.eq.s32.totalorder %s17, 7
      %p89 = por %p87, %p88
      %p90 = scmp.ne.s32.totalorder %s81, %s82
      %p91 = scmp.eq.s32.totalorder %s17, 0
      %p92 = por %p90, %p91
      %p93 = scmp.ne.s32.totalorder %s81, %s82
      %p94 = scmp.eq.s32.totalorder %s18, 7
      %p95 = por %p93, %p94
      %p97 = scmp.ne.s32.totalorder %s82, %s96
      %p98 = scmp.eq.s32.totalorder %s18, 0
      %p99 = por %p97, %p98
      %s100 = ssub.s32 %s19, %s31
      %s101 = ssub.s32 %s20, %s27
      %s102 = sor.u32 %s100, %s101
      %p103 = scmp.eq.s32.totalorder %s102, 0
      %s105 = sadd.s32 %s104, 1
      %s106 = scalar_select %p103, %s104, %s105
      %p109 = pneg %p103
      %p110 = scmp.eq.s32.totalorder %s12, 7
      %p111 = por %p109, %p110
      %p112 = scmp.ne.s32.totalorder %s104, %s107
      %p113 = scmp.eq.s32.totalorder %s12, 0
      %p114 = por %p112, %p113
      %p115 = scmp.ne.s32.totalorder %s104, %s107
      %p116 = scmp.eq.s32.totalorder %s17, 7
      %p117 = por %p115, %p116
      %p118 = scmp.ne.s32.totalorder %s107, %s108
      %p119 = scmp.eq.s32.totalorder %s17, 0
      %p120 = por %p118, %p119
      %p121 = scmp.ne.s32.totalorder %s107, %s108
      %p122 = scmp.eq.s32.totalorder %s18, 7
      %p123 = por %p121, %p122
      %p125 = scmp.ne.s32.totalorder %s108, %s124
      %p126 = scmp.eq.s32.totalorder %s18, 0
      %p127 = por %p125, %p126
      %p128 = scmp.le.s32.totalorder 1, %s12
      %p129 = scmp.lt.s32.totalorder %s12, 9
      %p130 = pnand %p128, %p129
      %p131 = pneg %p130
      // Predicated region
      $region9: #{tpu_custom_call.1} parent=5 // pred_check
        _
      $region10: #{tpu_custom_call.1} parent=5 // pred_check_branch
        %133 = sbr.rel (%p130) target = $region12
      $region11: #{tpu_custom_call.1} parent=5 // pred_region
        %s134 = ssub.s32 %s12, 1
        // Predicated region
        $region13: #{tpu_custom_call.1} parent=11 // pred_check
          %p135 = pneg %p71
        $region14: #{tpu_custom_call.1} parent=11 // pred_check_branch
          %137 = sbr.rel (%p135) target = $region16
        $region15: #{tpu_custom_call.1} parent=11 // pred_region
          _
        $region16: #{tpu_custom_call.1} parent=11 // pred_fallthru
          _
        // Predicated region
        $region17: #{tpu_custom_call.1} parent=11 // pred_check
          %p138 = pneg %p92
        $region18: #{tpu_custom_call.1} parent=11 // pred_check_branch
          %140 = sbr.rel (%p138) target = $region20
        $region19: #{tpu_custom_call.1} parent=11 // pred_region
          _
        $region20: #{tpu_custom_call.1} parent=11 // pred_fallthru
          _
      $region12: #{tpu_custom_call.1} parent=5 // pred_fallthru
        _
      %p141 = scmp.lt.s32.totalorder %s12, 8
      // Predicated region
      $region21: #{tpu_custom_call.1} parent=5 // pred_check
        %p142 = pneg %p141
      $region22: #{tpu_custom_call.1} parent=5 // pred_check_branch
        %144 = sbr.rel (%p142) target = $region24
      $region23: #{tpu_custom_call.1} parent=5 // pred_region
        // Predicated region
        $region25: #{tpu_custom_call.1} parent=23 // pred_check
          %p145 = pneg %p44
        $region26: #{tpu_custom_call.1} parent=23 // pred_check_branch
          %147 = sbr.rel (%p145) target = $region28
        $region27: #{tpu_custom_call.1} parent=23 // pred_region
          %p148 = scmp.lt.s32.totalorder %s19, 3
          %s149 = scalar_select %p148, %s19, 3
          %s150 = smul.addr %s149, 4
          %s151 = smul.addr %s150, 8
          %s152 = scalar_lea.vmem %s0, %s151
        $region28: #{tpu_custom_call.1} parent=23 // pred_fallthru
          _
      $region24: #{tpu_custom_call.1} parent=5 // pred_fallthru
        _
      %p153 = scmp.le.s32.totalorder 1, %s12
      %p154 = scmp.lt.s32.totalorder %s12, 9
      %p155 = pnand %p153, %p154
      %p156 = pneg %p155
      // Predicated region
      $region29: #{tpu_custom_call.1} parent=5 // pred_check
        _
      $region30: #{tpu_custom_call.1} parent=5 // pred_check_branch
        %158 = sbr.rel (%p155) target = $region32
      $region31: #{tpu_custom_call.1} parent=5 // pred_region
        %s159 = ssub.s32 %s12, 1
        %p160 = scmp.lt.s32.totalorder %s21, 3
        %s161 = scalar_select %p160, %s21, 3
        %s162 = smul.addr %s161, 4
        %s163 = smul.addr %s162, 8
        %s164 = scalar_lea.vmem %s0, %s163
        %p165 = pneg %p50
        %p166 = pneg %p47
        %p167 = pneg %p71
        %p168 = pneg %p68
        %p169 = pneg %p92
        %p170 = pneg %p89
        %p171 = pneg %p120
        %p172 = pneg %p117
        %s173 = sand.u32 %s107, 1
        %s174 = scalar_lea.sflag [#allocation3], %s173
        %s175 = sand.u32 %s107, 1
        %s176 = smul.addr %s175, 16
        %s177 = scalar_lea.vmem [#allocation2], %s176
        %p178 = scmp.lt.s32.totalorder %s21, 3
        %s179 = scalar_select %p178, %s21, 3
        %s180 = smul.addr %s179, 4
        %s181 = smul.addr %s180, 8
        %s182 = scalar_lea.vmem %s0, %s181
        %s183 = smul.u32 2, %s22
        %s184 = smul.u32 %s22, 16
        %s185 = scalar_lea.vmem %s182, %s184
        %v186 = vld [vmem:[%s185] sm:$0xff]
        %v187 = vld [vmem:[%s185 + $0x8] sm:$0xff]
        %s188 = sadd.s32 %s184, 31
        %p189 = scmp.lt.s32.totalorder %s188, 0
        %s190 = ssub.s32 0, %s188
        %s191 = scalar_select %p189, %s190, %s188
        %s192 = sand.u32 %s191, 31
        %s193 = ssub.s32 0, %s192
        %s194 = scalar_select %p189, %s193, %s192
        %p195 = scmp.ne.s32.totalorder %s194, 0
        %p196 = scmp.lt.s32.totalorder %s194, 0
        %p197 = pnand %p196, %p195
        %p198 = pneg %p197
        %s199 = sadd.s32 %s194, 32
        %s200 = scalar_select %p198, %s199, %s194
        %s201 = sadd.s32 %s184, 16
        %p202 = scmp.lt.s32.totalorder %s201, 0
        %s203 = ssub.s32 0, %s201
        %s204 = scalar_select %p202, %s203, %s201
        %s205 = sand.u32 %s204, 31
        %s206 = ssub.s32 0, %s205
        %s207 = scalar_select %p202, %s206, %s205
        %p208 = scmp.ne.s32.totalorder %s207, 0
        %p209 = scmp.lt.s32.totalorder %s207, 0
        %p210 = pnand %p209, %p208
        %p211 = pneg %p210
        %s212 = sadd.s32 %s207, 32
        %s213 = scalar_select %p211, %s212, %s207
        %s214 = scalar_lea.vmem %s182, %s200
        %v215 = vld [vmem:[%s214] sm:$0x1]
        %s216 = scalar_lea.vmem %s182, %s213
        %v217 = vld [vmem:[%s216] sm:$0x1]
        %vm220 = vcmask 1040384
        %v221 = vrot.slane %v186, 7
        %v222 = vrot.slane %v187, 7
        %v223 = vsel %vm220, %v221, %v222
        %v226 = vsel %vm220, %v215, %v221
        %vm227 = vcmask 1046528
        %v228 = vrot.slane %v186, 1
        %v229 = vrot.slane %v187, 1
        %v230 = vsel %vm227, %v228, %v229
        %v233 = vrot.slane %v217, 1
        %v235 = vsel %vm227, %v229, %v233
        %236 = vrot.lane.b32.xlu0 %v186, 8
        %v237 = vpop.permute.xlu0 %236
        %238 = vrot.lane.b32.xlu0 %v187, 8
        %v239 = vpop.permute.xlu0 %238
        %243 = vrot.lane.b32.xlu0 %v230, 16
        %v244 = vpop.permute.xlu0 %243
        %245 = vrot.lane.b32.xlu0 %v235, 16
        %v246 = vpop.permute.xlu0 %245
        %vm249 = vcmask 64512
        %v250 = vsel %vm249, %v226, %v237
        %v251 = vsel %vm249, %v223, %v239
        %vm252 = vcmask 130048
        %v253 = vsel %vm252, %v250, %v244
        %v254 = vsel %vm252, %v251, %v246
        %v255 = vld [vmem:[%s1] sm:$0xff]
        %v256 = vld [vmem:[%s1 + $0x8] sm:$0xff]
        %v257 = vld [vmem:[%s1 + $0x10] sm:$0xff]
        %vm258 = vcmask 195584
        %v260 = vsel %vm258, %v253, 0
        %v263 = vsel %vm258, %v254, 0
        %265 = vmatprep.subr.mxu0 0.0
        %266 = vmatpush1.msra.mxu0 0.0
        %267 = vmatprep.subr.mxu0 0.0
        %268 = vmatpush1.msra.mxu0 0.0
        %269 = vmatprep.subr.mxu0 0.0
        %270 = vmatpush1.msra.mxu0 0.0
        %271 = vmatprep.subr.mxu0 0.0
        %272 = vmatpush1.msra.mxu0 0.0
        %273 = vmatprep.subr.mxu0 0.0
        %274 = vmatpush1.msra.mxu0 0.0
        %275 = vmatprep.subr.mxu0 0.0
        %276 = vmatpush1.msra.mxu0 0.0
        %277 = vmatprep.subr.mxu0 0.0
        %278 = vmatpush1.msra.mxu0 0.0
        %279 = vmatprep.subr.mxu0 0.0
        %280 = vmatpush1.msra.mxu0 0.0
        %281 = vmatprep.subr.mxu0 0.0
        %282 = vmatpush1.msra.mxu0 0.0
        %283 = vmatprep.subr.mxu0 0.0
        %284 = vmatpush1.msra.mxu0 0.0
        %285 = vmatprep.subr.mxu0 0.0
        %286 = vmatpush1.msra.mxu0 0.0
        %287 = vmatprep.subr.mxu0 0.0
        %288 = vmatpush1.msra.mxu0 0.0
        %289 = vmatprep.subr.mxu0 0.0
        %290 = vmatpush1.msra.mxu0 0.0
        %291 = vmatprep.subr.mxu0 0.0
        %292 = vmatpush1.msra.mxu0 %v257
        %293 = vmatprep.subr.mxu0 0.0
        %294 = vmatpush1.msra.mxu0 %v256
        %295 = vmatprep.subr.mxu0 0.0
        %296 = vmatpush1.msra.mxu0 %v255
        %297 = vmatprep.subr.mxu0 0.0
        %298 = vmatpush2.msra.mxu0 0.0
        %299 = vmatprep.subr.mxu0 0.0
        %300 = vmatpush2.msra.mxu0 0.0
        %301 = vmatprep.subr.mxu0 0.0
        %302 = vmatpush2.msra.mxu0 0.0
        %303 = vmatprep.subr.mxu0 0.0
        %304 = vmatpush2.msra.mxu0 0.0
        %305 = vmatprep.subr.mxu0 0.0
        %306 = vmatpush2.msra.mxu0 0.0
        %307 = vmatprep.subr.mxu0 0.0
        %308 = vmatpush2.msra.mxu0 0.0
        %309 = vmatprep.subr.mxu0 0.0
        %310 = vmatpush2.msra.mxu0 0.0
        %311 = vmatprep.subr.mxu0 0.0
        %312 = vmatpush2.msra.mxu0 0.0
        %313 = vmatprep.subr.mxu0 0.0
        %314 = vmatpush2.msra.mxu0 0.0
        %315 = vmatprep.subr.mxu0 0.0
        %316 = vmatpush2.msra.mxu0 0.0
        %317 = vmatprep.subr.mxu0 0.0
        %318 = vmatpush2.msra.mxu0 0.0
        %319 = vmatprep.subr.mxu0 0.0
        %320 = vmatpush2.msra.mxu0 0.0
        %321 = vmatprep.subr.mxu0 0.0
        %322 = vmatpush2.msra.mxu0 0.0
        %323 = vmatprep.subr.mxu0 0.0
        %324 = vmatpush2.msra.mxu0 0.0
        %325 = vmatprep.subr.mxu0 0.0
        %326 = vmatpush2.msra.mxu0 0.0
        %327 = vmatprep.subr.mxu0 0.0
        %328 = vmatpush2.msra.mxu0 0.0
        %329 = vmatprep.mubr.f32.mxu0 0.0
        %330 = vmatmul.mubr.f32.gmra.mxu0 %v260
        %v331 = vpop.f32.mrf.mxu0
        %v332 = vadd.f32 0.0, %v331
        %v333 = vpop.f32.mrf.mxu0
        %334 = vmatprep.mubr.f32.mxu0 0.0
        %335 = vmatmul.mubr.f32.gmra.mxu0 %v263
        %v336 = vpop.f32.mrf.mxu0
        %v337 = vadd.f32 0.0, %v336
        %v338 = vpop.f32.mrf.mxu0
        %339 = vdwg.mxu0
        %s340 = scalar_lea.vmem %s2, %s184
        %v341 = vld [vmem:[%s340] sm:$0xff]
        %v342 = vld [vmem:[%s340 + $0x8] sm:$0xff]
        %v343 = vadd.f32 %v332, %v341
        %v344 = vadd.f32 %v337, %v342
        %345 = vst [vmem:[%s177] sm:$0xff] %v343
        %346 = vst [vmem:[%s177 + $0x8] sm:$0xff] %v344
        %s347 = sand.u32 %s107, 1
        %s348 = scalar_lea.sflag [#allocation3], %s347
        %s349 = sand.u32 %s107, 1
        %s350 = smul.addr %s349, 16
        %s351 = scalar_lea.vmem [#allocation2], %s350
        // Predicated region
        $region33: #{tpu_custom_call.1} parent=31 // pred_check
          %p352 = pneg %p117
        $region34: #{tpu_custom_call.1} parent=31 // pred_check_branch
          %354 = sbr.rel (%p352) target = $region36
        $region35: #{tpu_custom_call.1} parent=31 // pred_region
          %s355 = smul.u32 2, %s22
          %s357 = ssub.s32 256, 256
          %358 = vsyncadd %s348, %s357
          %s359 = smul.addr %s21, 4
          %s360 = sadd.s32 %s355, %s359
          %s361 = smul.addr %s360, 128
          %s362 = scalar_lea.hbm %s3, %s361
          %s363 = sshll.u32 %s351, 4
          %s364 = int_to_ptr.vmem [resolvable:$true] %s363
          %369 = dma.vmem_to_hbm [thread:$0]  %s364, 256, %s362, %s348, 128, 128, 8
        $region36: #{tpu_custom_call.1} parent=31 // pred_fallthru
          _
      $region32: #{tpu_custom_call.1} parent=5 // pred_fallthru
        _
      %p370 = scmp.le.s32.totalorder 2, %s12
      // Predicated region
      $region37: #{tpu_custom_call.1} parent=5 // pred_check
        %p371 = pneg %p370
      $region38: #{tpu_custom_call.1} parent=5 // pred_check_branch
        %373 = sbr.rel (%p371) target = $region40
      $region39: #{tpu_custom_call.1} parent=5 // pred_region
        %s374 = ssub.s32 %s12, 2
        // Predicated region
        $region41: #{tpu_custom_call.1} parent=39 // pred_check
          %p375 = pneg %p123
        $region42: #{tpu_custom_call.1} parent=39 // pred_check_branch
          %377 = sbr.rel (%p375) target = $region44
        $region43: #{tpu_custom_call.1} parent=39 // pred_region
          %s378 = sand.u32 %s108, 1
          %s379 = scalar_lea.sflag [#allocation3], %s378
          %s380 = sand.u32 %s108, 1
          %s381 = smul.addr %s380, 16
          %s382 = scalar_lea.vmem [#allocation2], %s381
          %383 = dma.done %s379, 256
        $region44: #{tpu_custom_call.1} parent=39 // pred_fallthru
          _
      $region40: #{tpu_custom_call.1} parent=5 // pred_fallthru
        _
    $region6: #{tpu_custom_call.1} parent=1 // loop_footer
      %s16 = sadd.s32 1, %s12
    $region7: #{tpu_custom_call.1} parent=1 // loop_footer_branch
      %11 = sbr.rel target = $region3
    $region8: #{tpu_custom_call.1} parent=1 // loop_exit
      _
    %384 = vsyncpa [#allocation3], 1
    %s385 = scalar_lea.sflag [#allocation3], 1
    %386 = vsyncpa %s385, 1

// kernel: tpu_custom_call.1
$region0: #{tpu_custom_call.1}
  #allocation0 [shape = 'u32[]', space=smem, size = 0x4, offset = 0x4, fixed_abs, tag = 'smem constant byte address 0x4 - core index']
  #allocation1 [shape = 'u32[144,128]{1,0:T(1,128)}', space=vmem, size = 0x12000, scoped, tag = 'internal scratch']
  %s0 = inlined_call_operand.vmem [shape: f32[4,32,8], index: 0, kind: input, shape index: {}]
  %s1 = inlined_call_operand.vmem [shape: f32[24,128], index: 1, kind: input, shape index: {}]
  %s2 = inlined_call_operand.vmem [shape: f32[32,128], index: 2, kind: input, shape index: {}]
  %s3 = inlined_call_operand.hbm [shape: f32[4,32,128], index: 3, kind: output, shape index: {}]
  %s4 = sld [smem:[#allocation0]]
  $region45: #{tpu_custom_call.1} parent=0
    _
  %s6 = ssub.s32 1, %s4
  %s7 = scalar_select 0, %s6, %s4
  $region1: #{tpu_custom_call.1} parent=0
    #allocation2 [shape = 'u8[16384]{0}', space=vmem, size = 0x4000, scoped, tag = 'output window, operand 0']
    #allocation3 [shape = 's32[2]{0}', space=sflag, size = 0x8, scoped, tag = 'scoped memory for tpu_custom_call.1']
    %8 = vsyncpa [#allocation3], 0
    %s9 = scalar_lea.sflag [#allocation3], 1
    %10 = vsyncpa %s9, 0
    loop: start=0, step=1, limit=10
    $region2: #{tpu_custom_call.1} parent=1 // loop_pre_header
      _
    $region3: #{tpu_custom_call.1} parent=1 // loop_header
      %s12 = sphi 0, %s16
      %p13 = scmp.ge.s32.totalorder %s12, 10
      %s19 = sphi 0, %s31
      %s20 = sphi 0, %s27
      %s21 = sphi 0, %s19
      %s22 = sphi 0, %s20
      %s23 = sphi 0, %s21
      %s24 = sphi 0, %s22
      %s34 = sphi 0, %s36
      %s37 = sphi 0, %s34
      %s38 = sphi 0, %s37
      %s54 = sphi 0, %s38
      %s58 = sphi 0, %s58
      %s60 = sphi 0, %s58
      %s61 = sphi 0, %s60
      %s75 = sphi 0, %s61
      %s79 = sphi 0, %s79
      %s81 = sphi 0, %s79
      %s82 = sphi 0, %s81
      %s96 = sphi 0, %s82
      %s104 = sphi 0, %s106
      %s107 = sphi 0, %s104
      %s108 = sphi 0, %s107
      %s124 = sphi 0, %s108
    $region4: #{tpu_custom_call.1} parent=1 // loop_header_branch
      %15 = sbr.rel (%p13) target = $region8
    $region5: #{tpu_custom_call.1} parent=1 // loop_body
      %s17 = ssub.s32 %s12, 1
      %s18 = ssub.s32 %s12, 2
      %s25 = sadd.s32 1, %s20
      %p26 = scmp.ge.s32.totalorder %s25, 2
      %s27 = scalar_select %p26, 0, %s25
      %s28 = sadd.s32 1, %s19
      %s29 = scalar_select %p26, %s28, %s19
      %p30 = scmp.ge.s32.totalorder %s29, 4
      %s31 = scalar_select %p30, 0, %s29
      %s32 = ssub.s32 %s19, %s31
      %p33 = scmp.eq.s32.totalorder %s32, 0
      %s35 = sadd.s32 %s34, 1
      %s36 = scalar_select %p33, %s34, %s35
      %p39 = pneg %p33
      %p40 = scmp.eq.s32.totalorder %s12, 7
      %p41 = por %p39, %p40
      %p42 = scmp.ne.s32.totalorder %s34, %s37
      %p43 = scmp.eq.s32.totalorder %s12, 0
      %p44 = por %p42, %p43
      %p45 = scmp.ne.s32.totalorder %s34, %s37
      %p46 = scmp.eq.s32.totalorder %s17, 7
      %p47 = por %p45, %p46
      %p48 = scmp.ne.s32.totalorder %s37, %s38
      %p49 = scmp.eq.s32.totalorder %s17, 0
      %p50 = por %p48, %p49
      %p51 = scmp.ne.s32.totalorder %s37, %s38
      %p52 = scmp.eq.s32.totalorder %s18, 7
      %p53 = por %p51, %p52
      %p55 = scmp.ne.s32.totalorder %s38, %s54
      %p56 = scmp.eq.s32.totalorder %s18, 0
      %p57 = por %p55, %p56
      %s59 = sadd.s32 %s58, 1
      %p62 = scmp.eq.s32.totalorder %s12, 7
      %p63 = scmp.ne.s32.totalorder %s58, %s60
      %p64 = scmp.eq.s32.totalorder %s12, 0
      %p65 = por %p63, %p64
      %p66 = scmp.ne.s32.totalorder %s58, %s60
      %p67 = scmp.eq.s32.totalorder %s17, 7
      %p68 = por %p66, %p67
      %p69 = scmp.ne.s32.totalorder %s60, %s61
      %p70 = scmp.eq.s32.totalorder %s17, 0
      %p71 = por %p69, %p70
      %p72 = scmp.ne.s32.totalorder %s60, %s61
      %p73 = scmp.eq.s32.totalorder %s18, 7
      %p74 = por %p72, %p73
      %p76 = scmp.ne.s32.totalorder %s61, %s75
      %p77 = scmp.eq.s32.totalorder %s18, 0
      %p78 = por %p76, %p77
      %s80 = sadd.s32 %s79, 1
      %p83 = scmp.eq.s32.totalorder %s12, 7
      %p84 = scmp.ne.s32.totalorder %s79, %s81
      %p85 = scmp.eq.s32.totalorder %s12, 0
      %p86 = por %p84, %p85
      %p87 = scmp.ne.s32.totalorder %s79, %s81
      %p88 = scmp.eq.s32.totalorder %s17, 7
      %p89 = por %p87, %p88
      %p90 = scmp.ne.s32.totalorder %s81, %s82
      %p91 = scmp.eq.s32.totalorder %s17, 0
      %p92 = por %p90, %p91
      %p93 = scmp.ne.s32.totalorder %s81, %s82
      %p94 = scmp.eq.s32.totalorder %s18, 7
      %p95 = por %p93, %p94
      %p97 = scmp.ne.s32.totalorder %s82, %s96
      %p98 = scmp.eq.s32.totalorder %s18, 0
      %p99 = por %p97, %p98
      %s100 = ssub.s32 %s19, %s31
      %s101 = ssub.s32 %s20, %s27
      %s102 = sor.u32 %s100, %s101
      %p103 = scmp.eq.s32.totalorder %s102, 0
      %s105 = sadd.s32 %s104, 1
      %s106 = scalar_select %p103, %s104, %s105
      %p109 = pneg %p103
      %p110 = scmp.eq.s32.totalorder %s12, 7
      %p111 = por %p109, %p110
      %p112 = scmp.ne.s32.totalorder %s104, %s107
      %p113 = scmp.eq.s32.totalorder %s12, 0
      %p114 = por %p112, %p113
      %p115 = scmp.ne.s32.totalorder %s104, %s107
      %p116 = scmp.eq.s32.totalorder %s17, 7
      %p117 = por %p115, %p116
      %p118 = scmp.ne.s32.totalorder %s107, %s108
      %p119 = scmp.eq.s32.totalorder %s17, 0
      %p120 = por %p118, %p119
      %p121 = scmp.ne.s32.totalorder %s107, %s108
      %p122 = scmp.eq.s32.totalorder %s18, 7
      %p123 = por %p121, %p122
      %p125 = scmp.ne.s32.totalorder %s108, %s124
      %p126 = scmp.eq.s32.totalorder %s18, 0
      %p127 = por %p125, %p126
      %p128 = scmp.le.s32.totalorder 1, %s12
      %p129 = scmp.lt.s32.totalorder %s12, 9
      %p130 = pnand %p128, %p129
      %p131 = pneg %p130
      // Predicated region
      $region9: #{tpu_custom_call.1} parent=5 // pred_check
        _
      $region10: #{tpu_custom_call.1} parent=5 // pred_check_branch
        %133 = sbr.rel (%p130) target = $region12
      $region11: #{tpu_custom_call.1} parent=5 // pred_region
        %s134 = ssub.s32 %s12, 1
        // Predicated region
        $region13: #{tpu_custom_call.1} parent=11 // pred_check
          %p135 = pneg %p71
        $region14: #{tpu_custom_call.1} parent=11 // pred_check_branch
          %137 = sbr.rel (%p135) target = $region16
        $region15: #{tpu_custom_call.1} parent=11 // pred_region
          _
        $region16: #{tpu_custom_call.1} parent=11 // pred_fallthru
          _
        // Predicated region
        $region17: #{tpu_custom_call.1} parent=11 // pred_check
          %p138 = pneg %p92
        $region18: #{tpu_custom_call.1} parent=11 // pred_check_branch
          %140 = sbr.rel (%p138) target = $region20
        $region19: #{tpu_custom_call.1} parent=11 // pred_region
          _
        $region20: #{tpu_custom_call.1} parent=11 // pred_fallthru
          _
      $region12: #{tpu_custom_call.1} parent=5 // pred_fallthru
        _
      %p141 = scmp.lt.s32.totalorder %s12, 8
      // Predicated region
      $region21: #{tpu_custom_call.1} parent=5 // pred_check
        %p142 = pneg %p141
      $region22: #{tpu_custom_call.1} parent=5 // pred_check_branch
        %144 = sbr.rel (%p142) target = $region24
      $region23: #{tpu_custom_call.1} parent=5 // pred_region
        // Predicated region
        $region25: #{tpu_custom_call.1} parent=23 // pred_check
          %p145 = pneg %p44
        $region26: #{tpu_custom_call.1} parent=23 // pred_check_branch
          %147 = sbr.rel (%p145) target = $region28
        $region27: #{tpu_custom_call.1} parent=23 // pred_region
          %p148 = scmp.lt.s32.totalorder %s19, 3
          %s149 = scalar_select %p148, %s19, 3
          %s150 = smul.addr %s149, 4
          %s151 = smul.addr %s150, 8
          %s152 = scalar_lea.vmem %s0, %s151
        $region28: #{tpu_custom_call.1} parent=23 // pred_fallthru
          _
      $region24: #{tpu_custom_call.1} parent=5 // pred_fallthru
        _
      %p153 = scmp.le.s32.totalorder 1, %s12
      %p154 = scmp.lt.s32.totalorder %s12, 9
      %p155 = pnand %p153, %p154
      %p156 = pneg %p155
      // Predicated region
      $region29: #{tpu_custom_call.1} parent=5 // pred_check
        _
      $region30: #{tpu_custom_call.1} parent=5 // pred_check_branch
        %158 = sbr.rel (%p155) target = $region32
      $region31: #{tpu_custom_call.1} parent=5 // pred_region
        %s159 = ssub.s32 %s12, 1
        %p160 = scmp.lt.s32.totalorder %s21, 3
        %s161 = scalar_select %p160, %s21, 3
        %s162 = smul.addr %s161, 4
        %s163 = smul.addr %s162, 8
        %s164 = scalar_lea.vmem %s0, %s163
        %p165 = pneg %p50
        %p166 = pneg %p47
        %p167 = pneg %p71
        %p168 = pneg %p68
        %p169 = pneg %p92
        %p170 = pneg %p89
        %p171 = pneg %p120
        %p172 = pneg %p117
        %s173 = sand.u32 %s107, 1
        %s174 = scalar_lea.sflag [#allocation3], %s173
        %s175 = sand.u32 %s107, 1
        %s176 = smul.addr %s175, 16
        %s177 = scalar_lea.vmem [#allocation2], %s176
        %p178 = scmp.lt.s32.totalorder %s21, 3
        %s179 = scalar_select %p178, %s21, 3
        %s180 = smul.addr %s179, 4
        %s181 = smul.addr %s180, 8
        %s182 = scalar_lea.vmem %s0, %s181
        %s183 = smul.u32 2, %s22
        %s184 = smul.u32 %s22, 16
        %s185 = scalar_lea.vmem %s182, %s184
        %v186 = vld [vmem:[%s185] sm:$0xff]
        %v187 = vld [vmem:[%s185 + $0x8] sm:$0xff]
        %s188 = sadd.s32 %s184, 31
        %p189 = scmp.lt.s32.totalorder %s188, 0
        %s190 = ssub.s32 0, %s188
        %s191 = scalar_select %p189, %s190, %s188
        %s192 = sand.u32 %s191, 31
        %s193 = ssub.s32 0, %s192
        %s194 = scalar_select %p189, %s193, %s192
        %p195 = scmp.ne.s32.totalorder %s194, 0
        %p196 = scmp.lt.s32.totalorder %s194, 0
        %p197 = pnand %p196, %p195
        %p198 = pneg %p197
        %s199 = sadd.s32 %s194, 32
        %s200 = scalar_select %p198, %s199, %s194
        %s201 = sadd.s32 %s184, 16
        %p202 = scmp.lt.s32.totalorder %s201, 0
        %s203 = ssub.s32 0, %s201
        %s204 = scalar_select %p202, %s203, %s201
        %s205 = sand.u32 %s204, 31
        %s206 = ssub.s32 0, %s205
        %s207 = scalar_select %p202, %s206, %s205
        %p208 = scmp.ne.s32.totalorder %s207, 0
        %p209 = scmp.lt.s32.totalorder %s207, 0
        %p210 = pnand %p209, %p208
        %p211 = pneg %p210
        %s212 = sadd.s32 %s207, 32
        %s213 = scalar_select %p211, %s212, %s207
        %s214 = scalar_lea.vmem %s182, %s200
        %v215 = vld [vmem:[%s214] sm:$0x1]
        %s216 = scalar_lea.vmem %s182, %s213
        %v217 = vld [vmem:[%s216] sm:$0x1]
        %vm220 = vcmask 1040384
        %v221 = vrot.slane %v186, 7
        %v222 = vrot.slane %v187, 7
        %v223 = vsel %vm220, %v221, %v222
        %v226 = vsel %vm220, %v215, %v221
        %vm227 = vcmask 1046528
        %v228 = vrot.slane %v186, 1
        %v229 = vrot.slane %v187, 1
        %v230 = vsel %vm227, %v228, %v229
        %v233 = vrot.slane %v217, 1
        %v235 = vsel %vm227, %v229, %v233
        %236 = vrot.lane.b32.xlu0 %v186, 8
        %v237 = vpop.permute.xlu0 %236
        %238 = vrot.lane.b32.xlu0 %v187, 8
        %v239 = vpop.permute.xlu0 %238
        %243 = vrot.lane.b32.xlu0 %v230, 16
        %v244 = vpop.permute.xlu0 %243
        %245 = vrot.lane.b32.xlu0 %v235, 16
        %v246 = vpop.permute.xlu0 %245
        %vm249 = vcmask 64512
        %v250 = vsel %vm249, %v226, %v237
        %v251 = vsel %vm249, %v223, %v239
        %vm252 = vcmask 130048
        %v253 = vsel %vm252, %v250, %v244
        %v254 = vsel %vm252, %v251, %v246
        %v255 = vld [vmem:[%s1] sm:$0xff]
        %v256 = vld [vmem:[%s1 + $0x8] sm:$0xff]
        %v257 = vld [vmem:[%s1 + $0x10] sm:$0xff]
        %vm258 = vcmask 195584
        %v260 = vsel %vm258, %v253, 0
        %v263 = vsel %vm258, %v254, 0
        %265 = vmatprep.subr.mxu0 0.0
        %266 = vmatpush1.msra.mxu0 0.0
        %267 = vmatprep.subr.mxu0 0.0
        %268 = vmatpush1.msra.mxu0 0.0
        %269 = vmatprep.subr.mxu0 0.0
        %270 = vmatpush1.msra.mxu0 0.0
        %271 = vmatprep.subr.mxu0 0.0
        %272 = vmatpush1.msra.mxu0 0.0
        %273 = vmatprep.subr.mxu0 0.0
        %274 = vmatpush1.msra.mxu0 0.0
        %275 = vmatprep.subr.mxu0 0.0
        %276 = vmatpush1.msra.mxu0 0.0
        %277 = vmatprep.subr.mxu0 0.0
        %278 = vmatpush1.msra.mxu0 0.0
        %279 = vmatprep.subr.mxu0 0.0
        %280 = vmatpush1.msra.mxu0 0.0
        %281 = vmatprep.subr.mxu0 0.0
        %282 = vmatpush1.msra.mxu0 0.0
        %283 = vmatprep.subr.mxu0 0.0
        %284 = vmatpush1.msra.mxu0 0.0
        %285 = vmatprep.subr.mxu0 0.0
        %286 = vmatpush1.msra.mxu0 0.0
        %287 = vmatprep.subr.mxu0 0.0
        %288 = vmatpush1.msra.mxu0 0.0
        %289 = vmatprep.subr.mxu0 0.0
        %290 = vmatpush1.msra.mxu0 0.0
        %291 = vmatprep.subr.mxu0 0.0
        %292 = vmatpush1.msra.mxu0 %v257
        %293 = vmatprep.subr.mxu0 0.0
        %294 = vmatpush1.msra.mxu0 %v256
        %295 = vmatprep.subr.mxu0 0.0
        %296 = vmatpush1.msra.mxu0 %v255
        %297 = vmatprep.subr.mxu0 0.0
        %298 = vmatpush2.msra.mxu0 0.0
        %299 = vmatprep.subr.mxu0 0.0
        %300 = vmatpush2.msra.mxu0 0.0
        %301 = vmatprep.subr.mxu0 0.0
        %302 = vmatpush2.msra.mxu0 0.0
        %303 = vmatprep.subr.mxu0 0.0
        %304 = vmatpush2.msra.mxu0 0.0
        %305 = vmatprep.subr.mxu0 0.0
        %306 = vmatpush2.msra.mxu0 0.0
        %307 = vmatprep.subr.mxu0 0.0
        %308 = vmatpush2.msra.mxu0 0.0
        %309 = vmatprep.subr.mxu0 0.0
        %310 = vmatpush2.msra.mxu0 0.0
        %311 = vmatprep.subr.mxu0 0.0
        %312 = vmatpush2.msra.mxu0 0.0
        %313 = vmatprep.subr.mxu0 0.0
        %314 = vmatpush2.msra.mxu0 0.0
        %315 = vmatprep.subr.mxu0 0.0
        %316 = vmatpush2.msra.mxu0 0.0
        %317 = vmatprep.subr.mxu0 0.0
        %318 = vmatpush2.msra.mxu0 0.0
        %319 = vmatprep.subr.mxu0 0.0
        %320 = vmatpush2.msra.mxu0 0.0
        %321 = vmatprep.subr.mxu0 0.0
        %322 = vmatpush2.msra.mxu0 0.0
        %323 = vmatprep.subr.mxu0 0.0
        %324 = vmatpush2.msra.mxu0 0.0
        %325 = vmatprep.subr.mxu0 0.0
        %326 = vmatpush2.msra.mxu0 0.0
        %327 = vmatprep.subr.mxu0 0.0
        %328 = vmatpush2.msra.mxu0 0.0
        %329 = vmatprep.mubr.f32.mxu0 0.0
        %330 = vmatmul.mubr.f32.gmra.mxu0 %v260
        %v331 = vpop.f32.mrf.mxu0
        %v332 = vadd.f32 0.0, %v331
        %v333 = vpop.f32.mrf.mxu0
        %334 = vmatprep.mubr.f32.mxu0 0.0
        %335 = vmatmul.mubr.f32.gmra.mxu0 %v263
        %v336 = vpop.f32.mrf.mxu0
        %v337 = vadd.f32 0.0, %v336
        %v338 = vpop.f32.mrf.mxu0
        %339 = vdwg.mxu0
        %s340 = scalar_lea.vmem %s2, %s184
        %v341 = vld [vmem:[%s340] sm:$0xff]
        %v342 = vld [vmem:[%s340 + $0x8] sm:$0xff]
        %v343 = vadd.f32 %v332, %v341
        %v344 = vadd.f32 %v337, %v342
        %345 = vst [vmem:[%s177] sm:$0xff] %v343
        %346 = vst [vmem:[%s177 + $0x8] sm:$0xff] %v344
        %s347 = sand.u32 %s107, 1
        %s348 = scalar_lea.sflag [#allocation3], %s347
        %s349 = sand.u32 %s107, 1
        %s350 = smul.addr %s349, 16
        %s351 = scalar_lea.vmem [#allocation2], %s350
        // Predicated region
        $region33: #{tpu_custom_call.1} parent=31 // pred_check
          %p352 = pneg %p117
        $region34: #{tpu_custom_call.1} parent=31 // pred_check_branch
          %354 = sbr.rel (%p352) target = $region36
        $region35: #{tpu_custom_call.1} parent=31 // pred_region
          %s355 = smul.u32 2, %s22
          %s357 = ssub.s32 256, 256
          %358 = vsyncadd %s348, %s357
          %s359 = smul.addr %s21, 4
          %s360 = sadd.s32 %s355, %s359
          %s361 = smul.addr %s360, 128
          %s362 = scalar_lea.hbm %s3, %s361
          %s363 = sshll.u32 %s351, 4
          %s364 = int_to_ptr.vmem [resolvable:$true] %s363
          %369 = dma.vmem_to_hbm [thread:$0]  %s364, 256, %s362, %s348, 128, 128, 8
        $region36: #{tpu_custom_call.1} parent=31 // pred_fallthru
          _
      $region32: #{tpu_custom_call.1} parent=5 // pred_fallthru
        _
      %p370 = scmp.le.s32.totalorder 2, %s12
      // Predicated region
      $region37: #{tpu_custom_call.1} parent=5 // pred_check
        %p371 = pneg %p370
      $region38: #{tpu_custom_call.1} parent=5 // pred_check_branch
        %373 = sbr.rel (%p371) target = $region40
      $region39: #{tpu_custom_call.1} parent=5 // pred_region
        %s374 = ssub.s32 %s12, 2
        // Predicated region
        $region41: #{tpu_custom_call.1} parent=39 // pred_check
          %p375 = pneg %p123
        $region42: #{tpu_custom_call.1} parent=39 // pred_check_branch
          %377 = sbr.rel (%p375) target = $region44
        $region43: #{tpu_custom_call.1} parent=39 // pred_region
          %s378 = sand.u32 %s108, 1
          %s379 = scalar_lea.sflag [#allocation3], %s378
          %s380 = sand.u32 %s108, 1
          %s381 = smul.addr %s380, 16
          %s382 = scalar_lea.vmem [#allocation2], %s381
          %383 = dma.done %s379, 256
        $region44: #{tpu_custom_call.1} parent=39 // pred_fallthru
          _
      $region40: #{tpu_custom_call.1} parent=5 // pred_fallthru
        _
    $region6: #{tpu_custom_call.1} parent=1 // loop_footer
      %s16 = sadd.s32 1, %s12
    $region7: #{tpu_custom_call.1} parent=1 // loop_footer_branch
      %11 = sbr.rel target = $region3
    $region8: #{tpu_custom_call.1} parent=1 // loop_exit
      _
    %384 = vsyncpa [#allocation3], 1
    %s385 = scalar_lea.sflag [#allocation3], 1
    %386 = vsyncpa %s385, 1

</llo_original>
